<compile_context>
chip_gen: v5e
topology: v5e:2x2
jax: 0.10.0
libtpu: 0.0.40
codegen_flags: <defaults>
</compile_context>

<pallas_src>
import functools

import jax
import jax.numpy as jnp
from jax import lax
from jax.experimental import pallas as pl
from jax.experimental.pallas import tpu as pltpu


def _nlba_kernel(r0_ref, r1_ref, it_ref,
                 hv0_ref, hv1_ref, hw_ref,
                 ov0_ref, ov1_ref, ow_ref,
                 out_ref):
    """One batch tile of the NLBA forward pass.

    r0_ref/r1_ref/it_ref : (tb, E)  activation batch tiles (fresh every step)
    hv0/hv1/hw           : (E, H)   hidden-layer weights       (resident)
    ov0/ov1              : (1, E)   output-bias vectors (rows)  (resident)
    ow                   : (1, H)   output weight (row)         (resident)
    out_ref              : (1, tb)  sigmoid(prediction), batch on the lane axis
    """
    wdt = hv0_ref.dtype
    # Promote activations to the weight dtype *after* the HBM->VMEM load, so
    # bf16-resident inputs keep the bandwidth win but compute stays exact f32.
    r0 = r0_ref[...].astype(wdt)                                 # (tb, E)
    r1 = r1_ref[...].astype(wdt)                                 # (tb, E)
    it = it_ref[...].astype(wdt)                                 # (tb, E)

    # Hidden layer: relu(R0@hv0 + R1@hv1 + item@hw), f32 accumulation.
    hidden = jnp.dot(r0, hv0_ref[...], preferred_element_type=jnp.float32)
    hidden = hidden + jnp.dot(r1, hv1_ref[...], preferred_element_type=jnp.float32)
    hidden = hidden + jnp.dot(it, hw_ref[...], preferred_element_type=jnp.float32)
    hidden = jnp.maximum(hidden, 0.0)                            # (tb, H) f32

    # Output bias, lane-dense: (1,E) . (tb,E)^T -> (1, tb).
    dn = (((1,), (1,)), ((), ()))
    out_bias = lax.dot_general(ov0_ref[...], r0, dn,
                               preferred_element_type=jnp.float32)
    out_bias = out_bias + lax.dot_general(ov1_ref[...], r1, dn,
                                          preferred_element_type=jnp.float32)

    # Final logit, lane-dense: (1,H) . (tb,H)^T -> (1, tb).
    logits = lax.dot_general(ow_ref[...], hidden.astype(ow_ref.dtype), dn,
                             preferred_element_type=jnp.float32)

    out_ref[...] = jax.nn.sigmoid(logits + out_bias).astype(out_ref.dtype)


def prepare_weights(params):
    """One-time weight prep (hoisted out of the per-call path)."""
    return {
        "hidden_v0": params["hidden_v0"],          # (E, H)
        "hidden_v1": params["hidden_v1"],          # (E, H)
        "hidden_w": params["hidden_w"],            # (E, H)
        "output_v0_row": params["output_v0"].T,    # (1, E)
        "output_v1_row": params["output_v1"].T,    # (1, E)
        "output_w_row": params["output_w"].T,      # (1, H)
    }


def _round_up(x, m):
    return -(-x // m) * m


def _pick_tb(B, E, itemsize, target_tb, vmem_budget=24 * 1024 * 1024):
    """Batch tile: multiple of 128, within the VMEM budget (v7x-safe), and
    small enough that the batch grid keeps >= 2 steps so the "parallel" axis
    can shard across both v7x TensorCores."""
    if B <= 128:
        return B                                   # single full-extent block
    # Double-buffered: 3 activation tiles (input dtype) + 1 f32 output row.
    per_row = 2 * (3 * E * itemsize + 4)
    vmem_cap = max(128, (vmem_budget // per_row) // 128 * 128)
    two_step_cap = max(128, _round_up(pl.cdiv(B, 2), 128))
    tb = min(max(128, (target_tb // 128) * 128), vmem_cap, two_step_cap)
    return tb


@functools.partial(jax.jit, static_argnames=("target_tb",))
def nlba_forward(R0, R1, itemEmbed, weights, target_tb=4096):
    """NLBARec forward. Returns prediction of shape (B,) in float32."""
    B, E = R0.shape
    H = weights["hidden_w"].shape[1]

    tb = _pick_tb(B, E, R0.dtype.itemsize, target_tb)
    grid = (pl.cdiv(B, tb),)                       # partial last block is masked

    act_spec = pl.BlockSpec((tb, E), lambda i: (i, 0))
    cost = pl.CostEstimate(
        flops=2 * B * (3 * E * H + H + 2 * E),
        transcendentals=B,
        bytes_accessed=(3 * B * E * R0.dtype.itemsize + B * 4
                        + 3 * E * H * 4 + (2 * E + H) * 4),
    )

    pred = pl.pallas_call(
        _nlba_kernel,
        out_shape=jax.ShapeDtypeStruct((1, B), jnp.float32),
        grid=grid,
        in_specs=[
            # Activations: a fresh (tb, E) tile every grid step, no wrapper copy.
            act_spec, act_spec, act_spec,
            # Weights: constant block index -> resident across the batch grid.
            pl.BlockSpec((E, H), lambda i: (0, 0)),
            pl.BlockSpec((E, H), lambda i: (0, 0)),
            pl.BlockSpec((E, H), lambda i: (0, 0)),
            pl.BlockSpec((1, E), lambda i: (0, 0)),
            pl.BlockSpec((1, E), lambda i: (0, 0)),
            pl.BlockSpec((1, H), lambda i: (0, 0)),
        ],
        # Lane-dense output slab: batch on the lane axis, unmasked full-lane
        # stores except on the (possibly partial) last block.
        out_specs=pl.BlockSpec((1, tb), lambda i: (0, i)),
        compiler_params=pltpu.CompilerParams(
            dimension_semantics=("parallel",),     # batch grid shards across TCs
            vmem_limit_bytes=32 * 1024 * 1024,
        ),
        cost_estimate=cost,
    )(R0, R1, itemEmbed,
      weights["hidden_v0"], weights["hidden_v1"], weights["hidden_w"],
      weights["output_v0_row"], weights["output_v1_row"], weights["output_w_row"])

    # torch: prediction.squeeze()
    return pred[0]


def _reference_forward(R0, R1, itemEmbed, params):
    hp = jax.lax.Precision.HIGHEST
    hidden_bias = (jnp.dot(R0, params["hidden_v0"], precision=hp)
                   + jnp.dot(R1, params["hidden_v1"], precision=hp))
    hidden_out = jax.nn.relu(
        jnp.dot(itemEmbed, params["hidden_w"], precision=hp) + hidden_bias)
    output_bias = (jnp.dot(R0, params["output_v0"], precision=hp)
                   + jnp.dot(R1, params["output_v1"], precision=hp))
    pred = jax.nn.sigmoid(
        jnp.dot(hidden_out, params["output_w"], precision=hp) + output_bias)
    return jnp.squeeze(pred, axis=-1)


def init_params(key, embedding_size, hidden_dim):
    ks = jax.random.split(key, 6)
    return {
        "output_v0": jax.random.normal(ks[0], (embedding_size, 1), jnp.float32),
        "output_v1": jax.random.normal(ks[1], (embedding_size, 1), jnp.float32),
        "output_w": jax.random.normal(ks[2], (hidden_dim, 1), jnp.float32),
        "hidden_v0": jax.random.normal(ks[3], (embedding_size, hidden_dim), jnp.float32),
        "hidden_v1": jax.random.normal(ks[4], (embedding_size, hidden_dim), jnp.float32),
        "hidden_w": jax.random.normal(ks[5], (embedding_size, hidden_dim), jnp.float32),
    }


if __name__ == "__main__":
    key = jax.random.PRNGKey(0)
    k_param, k_r0, k_r1, k_item = jax.random.split(key, 4)

    B, E, H = 512, 32, 32
    params = init_params(k_param, E, H)
    weights = prepare_weights(params)          # one-time, outside the hot path
    R0 = jax.random.normal(k_r0, (B, E), jnp.float32)
    R1 = jax.random.normal(k_r1, (B, E), jnp.float32)
    itemEmbed = jax.random.normal(k_item, (B, E), jnp.float32)

    # f32 path: 2-step batch grid (tb capped for >=2 steps), checked vs reference.
    pred = nlba_forward(R0, R1, itemEmbed, weights)
    pred = jax.block_until_ready(pred)
    ref = _reference_forward(R0, R1, itemEmbed, params)
    assert pred.shape == (B,)
    assert jnp.allclose(pred, ref, atol=5e-4, rtol=5e-4), float(
        jnp.max(jnp.abs(pred - ref)))

    # Ragged batch: exercises the partial-last-block (masked store) path.
    Bs = 300
    pred_s = nlba_forward(R0[:Bs], R1[:Bs], itemEmbed[:Bs], weights)
    pred_s = jax.block_until_ready(pred_s)
    ref_s = _reference_forward(R0[:Bs], R1[:Bs], itemEmbed[:Bs], params)
    assert pred_s.shape == (Bs,)
    assert jnp.allclose(pred_s, ref_s, atol=5e-4, rtol=5e-4), float(
        jnp.max(jnp.abs(pred_s - ref_s)))

    # bf16-resident activations (genuine HBM read halving on v6e/v7x): the
    # kernel promotes to f32 after the load, so it matches the f32 reference
    # evaluated on the bf16-rounded inputs.
    R0b = R0.astype(jnp.bfloat16)
    R1b = R1.astype(jnp.bfloat16)
    itb = itemEmbed.astype(jnp.bfloat16)
    pred_b = nlba_forward(R0b, R1b, itb, weights)
    pred_b = jax.block_until_ready(pred_b)
    ref_b = _reference_forward(R0b.astype(jnp.float32), R1b.astype(jnp.float32),
                               itb.astype(jnp.float32), params)
    assert pred_b.shape == (B,)
    assert jnp.allclose(pred_b, ref_b, atol=1e-3, rtol=1e-3), float(
        jnp.max(jnp.abs(pred_b - ref_b)))

    print("KERNEL_OK")
</pallas_src>

<mosaic_0001>
module attributes {stable_mosaic.version = 11 : i64} {
  func.func @_nlba_kernel(%arg0: i32, %arg1: memref<256x32xf32, #tpu.memory_space<vmem>>, %arg2: memref<256x32xf32, #tpu.memory_space<vmem>>, %arg3: memref<256x32xf32, #tpu.memory_space<vmem>>, %arg4: memref<32x32xf32, #tpu.memory_space<vmem>>, %arg5: memref<32x32xf32, #tpu.memory_space<vmem>>, %arg6: memref<32x32xf32, #tpu.memory_space<vmem>>, %arg7: memref<1x32xf32, #tpu.memory_space<vmem>>, %arg8: memref<1x32xf32, #tpu.memory_space<vmem>>, %arg9: memref<1x32xf32, #tpu.memory_space<vmem>>, %arg10: memref<1x256xf32, #tpu.memory_space<vmem>>) attributes {dimension_semantics = [#tpu.dimension_semantics<parallel>], iteration_bounds = array<i64: 2>, scalar_prefetch = 0 : i64, scratch_operands = 0 : i64, tpu.core_type = #tpu.core_type<tc>, window_params = [{transform_indices = @transform_0, window_bounds = array<i64: 256, 32>}, {transform_indices = @transform_1, window_bounds = array<i64: 256, 32>}, {transform_indices = @transform_2, window_bounds = array<i64: 256, 32>}, {pipeline_mode = #tpu.pipeline_mode<synchronous>, transform_indices = @transform_3, window_bounds = array<i64: 32, 32>}, {pipeline_mode = #tpu.pipeline_mode<synchronous>, transform_indices = @transform_4, window_bounds = array<i64: 32, 32>}, {pipeline_mode = #tpu.pipeline_mode<synchronous>, transform_indices = @transform_5, window_bounds = array<i64: 32, 32>}, {pipeline_mode = #tpu.pipeline_mode<synchronous>, transform_indices = @transform_6, window_bounds = array<i64: 1, 32>}, {pipeline_mode = #tpu.pipeline_mode<synchronous>, transform_indices = @transform_7, window_bounds = array<i64: 1, 32>}, {pipeline_mode = #tpu.pipeline_mode<synchronous>, transform_indices = @transform_8, window_bounds = array<i64: 1, 32>}, {transform_indices = @transform_9, window_bounds = array<i64: 1, 256>}]} {
    %c0 = arith.constant 0 : index
    %c0_0 = arith.constant 0 : index
    %0 = vector.load %arg1[%c0, %c0_0] : memref<256x32xf32, #tpu.memory_space<vmem>>, vector<256x32xf32>
    %c0_1 = arith.constant 0 : index
    %c0_2 = arith.constant 0 : index
    %1 = vector.load %arg2[%c0_1, %c0_2] : memref<256x32xf32, #tpu.memory_space<vmem>>, vector<256x32xf32>
    %c0_3 = arith.constant 0 : index
    %c0_4 = arith.constant 0 : index
    %2 = vector.load %arg3[%c0_3, %c0_4] : memref<256x32xf32, #tpu.memory_space<vmem>>, vector<256x32xf32>
    %c0_5 = arith.constant 0 : index
    %c0_6 = arith.constant 0 : index
    %3 = vector.load %arg4[%c0_5, %c0_6] : memref<32x32xf32, #tpu.memory_space<vmem>>, vector<32x32xf32>
    %cst = arith.constant dense<0.000000e+00> : vector<256x32xf32>
    %4 = tpu.matmul %0, %3, %cst {dimension_numbers = #tpu.dot_dimension_numbers<[1], [0], [0], [1], [0, 0, 1, 1], [], []>} : vector<256x32xf32>, vector<32x32xf32>, vector<256x32xf32> -> vector<256x32xf32>
    %c0_7 = arith.constant 0 : index
    %c0_8 = arith.constant 0 : index
    %5 = vector.load %arg5[%c0_7, %c0_8] : memref<32x32xf32, #tpu.memory_space<vmem>>, vector<32x32xf32>
    %cst_9 = arith.constant dense<0.000000e+00> : vector<256x32xf32>
    %6 = tpu.matmul %1, %5, %cst_9 {dimension_numbers = #tpu.dot_dimension_numbers<[1], [0], [0], [1], [0, 0, 1, 1], [], []>} : vector<256x32xf32>, vector<32x32xf32>, vector<256x32xf32> -> vector<256x32xf32>
    %7 = arith.addf %4, %6 : vector<256x32xf32>
    %c0_10 = arith.constant 0 : index
    %c0_11 = arith.constant 0 : index
    %8 = vector.load %arg6[%c0_10, %c0_11] : memref<32x32xf32, #tpu.memory_space<vmem>>, vector<32x32xf32>
    %cst_12 = arith.constant dense<0.000000e+00> : vector<256x32xf32>
    %9 = tpu.matmul %2, %8, %cst_12 {dimension_numbers = #tpu.dot_dimension_numbers<[1], [0], [0], [1], [0, 0, 1, 1], [], []>} : vector<256x32xf32>, vector<32x32xf32>, vector<256x32xf32> -> vector<256x32xf32>
    %10 = arith.addf %7, %9 : vector<256x32xf32>
    %cst_13 = arith.constant 0.000000e+00 : f32
    %11 = vector.broadcast %cst_13 : f32 to vector<256x32xf32>
    %12 = arith.maximumf %10, %11 : vector<256x32xf32>
    %c0_14 = arith.constant 0 : index
    %c0_15 = arith.constant 0 : index
    %13 = vector.load %arg7[%c0_14, %c0_15] : memref<1x32xf32, #tpu.memory_space<vmem>>, vector<1x32xf32>
    %cst_16 = arith.constant dense<0.000000e+00> : vector<1x256xf32>
    %14 = tpu.matmul %13, %0, %cst_16 {dimension_numbers = #tpu.dot_dimension_numbers<[1], [1], [0], [0], [0, 0, 1, 0], [], []>} : vector<1x32xf32>, vector<256x32xf32>, vector<1x256xf32> -> vector<1x256xf32>
    %c0_17 = arith.constant 0 : index
    %c0_18 = arith.constant 0 : index
    %15 = vector.load %arg8[%c0_17, %c0_18] : memref<1x32xf32, #tpu.memory_space<vmem>>, vector<1x32xf32>
    %cst_19 = arith.constant dense<0.000000e+00> : vector<1x256xf32>
    %16 = tpu.matmul %15, %1, %cst_19 {dimension_numbers = #tpu.dot_dimension_numbers<[1], [1], [0], [0], [0, 0, 1, 0], [], []>} : vector<1x32xf32>, vector<256x32xf32>, vector<1x256xf32> -> vector<1x256xf32>
    %17 = arith.addf %14, %16 : vector<1x256xf32>
    %c0_20 = arith.constant 0 : index
    %c0_21 = arith.constant 0 : index
    %18 = vector.load %arg9[%c0_20, %c0_21] : memref<1x32xf32, #tpu.memory_space<vmem>>, vector<1x32xf32>
    %cst_22 = arith.constant dense<0.000000e+00> : vector<1x256xf32>
    %19 = tpu.matmul %18, %12, %cst_22 {dimension_numbers = #tpu.dot_dimension_numbers<[1], [1], [0], [0], [0, 0, 1, 0], [], []>} : vector<1x32xf32>, vector<256x32xf32>, vector<1x256xf32> -> vector<1x256xf32>
    %20 = arith.addf %19, %17 : vector<1x256xf32>
    %21 = arith.negf %20 : vector<1x256xf32>
    %22 = math.exp %21 : vector<1x256xf32>
    %cst_23 = arith.constant 1.000000e+00 : f32
    %23 = vector.broadcast %cst_23 : f32 to vector<1x256xf32>
    %24 = arith.addf %23, %22 : vector<1x256xf32>
    %25 = arith.divf %23, %24 : vector<1x256xf32>
    %c0_24 = arith.constant 0 : index
    %c0_25 = arith.constant 0 : index
    %26 = vector.load %arg10[%c0_24, %c0_25] : memref<1x256xf32, #tpu.memory_space<vmem>>, vector<1x256xf32>
    tpu.vector_store %arg10[%c0_24, %c0_25], %25 {strides = array<i32>} : memref<1x256xf32, #tpu.memory_space<vmem>>, vector<1x256xf32>,
    return
  }
  func.func @transform_0(%arg0: i32) -> (i32, i32) {
    %c0_i32 = arith.constant 0 : i32
    %c0_i32_0 = arith.constant 0 : i32
    return %arg0, %c0_i32 : i32, i32
  }
  func.func @transform_1(%arg0: i32) -> (i32, i32) {
    %c0_i32 = arith.constant 0 : i32
    %c0_i32_0 = arith.constant 0 : i32
    return %arg0, %c0_i32 : i32, i32
  }
  func.func @transform_2(%arg0: i32) -> (i32, i32) {
    %c0_i32 = arith.constant 0 : i32
    %c0_i32_0 = arith.constant 0 : i32
    return %arg0, %c0_i32 : i32, i32
  }
  func.func @transform_3(%arg0: i32) -> (i32, i32) {
    %c0_i32 = arith.constant 0 : i32
    %c0_i32_0 = arith.constant 0 : i32
    %c0_i32_1 = arith.constant 0 : i32
    return %c0_i32, %c0_i32_0 : i32, i32
  }
  func.func @transform_4(%arg0: i32) -> (i32, i32) {
    %c0_i32 = arith.constant 0 : i32
    %c0_i32_0 = arith.constant 0 : i32
    %c0_i32_1 = arith.constant 0 : i32
    return %c0_i32, %c0_i32_0 : i32, i32
  }
  func.func @transform_5(%arg0: i32) -> (i32, i32) {
    %c0_i32 = arith.constant 0 : i32
    %c0_i32_0 = arith.constant 0 : i32
    %c0_i32_1 = arith.constant 0 : i32
    return %c0_i32, %c0_i32_0 : i32, i32
  }
  func.func @transform_6(%arg0: i32) -> (i32, i32) {
    %c0_i32 = arith.constant 0 : i32
    %c0_i32_0 = arith.constant 0 : i32
    %c0_i32_1 = arith.constant 0 : i32
    return %c0_i32, %c0_i32_0 : i32, i32
  }
  func.func @transform_7(%arg0: i32) -> (i32, i32) {
    %c0_i32 = arith.constant 0 : i32
    %c0_i32_0 = arith.constant 0 : i32
    %c0_i32_1 = arith.constant 0 : i32
    return %c0_i32, %c0_i32_0 : i32, i32
  }
  func.func @transform_8(%arg0: i32) -> (i32, i32) {
    %c0_i32 = arith.constant 0 : i32
    %c0_i32_0 = arith.constant 0 : i32
    %c0_i32_1 = arith.constant 0 : i32
    return %c0_i32, %c0_i32_0 : i32, i32
  }
  func.func @transform_9(%arg0: i32) -> (i32, i32) {
    %c0_i32 = arith.constant 0 : i32
    %c0_i32_0 = arith.constant 0 : i32
    return %c0_i32, %arg0 : i32, i32
  }
}

</mosaic_0001>

<llo_original>
// kernel: nlba_forward.1
$region0: #{nlba_forward.1}
  #allocation0 [shape = 'u32[]', space=smem, size = 0x4, offset = 0x4, fixed_abs, tag = 'smem constant byte address 0x4 - core index']
  #allocation1 [shape = 'u32[72,128]{1,0:T(1,128)}', space=vmem, size = 0x9000, scoped, tag = 'internal scratch']
  %s0 = inlined_call_operand.vmem [shape: f32[512,32], index: 0, kind: input, shape index: {}]
  %s1 = inlined_call_operand.vmem [shape: f32[512,32], index: 1, kind: input, shape index: {}]
  %s2 = inlined_call_operand.vmem [shape: f32[512,32], index: 2, kind: input, shape index: {}]
  %s3 = inlined_call_operand.vmem [shape: f32[32,32], index: 3, kind: input, shape index: {}]
  %s4 = inlined_call_operand.vmem [shape: f32[32,32], index: 4, kind: input, shape index: {}]
  %s5 = inlined_call_operand.vmem [shape: f32[32,32], index: 5, kind: input, shape index: {}]
  %s6 = inlined_call_operand.vmem [shape: f32[1,32], index: 6, kind: input, shape index: {}]
  %s7 = inlined_call_operand.vmem [shape: f32[1,32], index: 7, kind: input, shape index: {}]
  %s8 = inlined_call_operand.vmem [shape: f32[1,32], index: 8, kind: input, shape index: {}]
  %s9 = inlined_call_operand.hbm [shape: f32[1,512], index: 9, kind: output, shape index: {}]
  %s10 = sld [smem:[#allocation0]]
  $region69: #{nlba_forward.1} parent=0
    _
  %s12 = ssub.s32 1, %s10
  %s13 = scalar_select 0, %s12, %s10
  $region1: #{nlba_forward.1} parent=0
    #allocation2 [shape = 'u8[2048]{0}', space=vmem, size = 0x800, scoped, tag = 'output window, operand 0']
    #allocation3 [shape = 's32[2]{0}', space=sflag, size = 0x8, scoped, tag = 'scoped memory for nlba_forward.1']
    %14 = vsyncpa [#allocation3], 0
    %s15 = scalar_lea.sflag [#allocation3], 1
    %16 = vsyncpa %s15, 0
    loop: start=0, step=1, limit=4
    $region2: #{nlba_forward.1} parent=1 // loop_pre_header
      _
    $region3: #{nlba_forward.1} parent=1 // loop_header
      %s18 = sphi 0, %s22
      %p19 = scmp.ge.s32.totalorder %s18, 4
      %s28 = sphi 0, %s30
      %s31 = sphi 0, %s28
      %s32 = sphi 0, %s31
      %s48 = sphi 0, %s32
      %s54 = sphi 0, %s56
      %s57 = sphi 0, %s54
      %s58 = sphi 0, %s57
      %s74 = sphi 0, %s58
      %s80 = sphi 0, %s82
      %s83 = sphi 0, %s80
      %s84 = sphi 0, %s83
      %s100 = sphi 0, %s84
      %s104 = sphi 0, %s104
      %s106 = sphi 0, %s104
      %s107 = sphi 0, %s106
      %s121 = sphi 0, %s107
      %s125 = sphi 0, %s125
      %s127 = sphi 0, %s125
      %s128 = sphi 0, %s127
      %s142 = sphi 0, %s128
      %s146 = sphi 0, %s146
      %s148 = sphi 0, %s146
      %s149 = sphi 0, %s148
      %s163 = sphi 0, %s149
      %s167 = sphi 0, %s167
      %s169 = sphi 0, %s167
      %s170 = sphi 0, %s169
      %s184 = sphi 0, %s170
      %s188 = sphi 0, %s188
      %s190 = sphi 0, %s188
      %s191 = sphi 0, %s190
      %s205 = sphi 0, %s191
      %s209 = sphi 0, %s209
      %s211 = sphi 0, %s209
      %s212 = sphi 0, %s211
      %s226 = sphi 0, %s212
      %s232 = sphi 0, %s234
      %s235 = sphi 0, %s232
      %s236 = sphi 0, %s235
      %s252 = sphi 0, %s236
    $region4: #{nlba_forward.1} parent=1 // loop_header_branch
      %21 = sbr.rel (%p19) target = $region8
    $region5: #{nlba_forward.1} parent=1 // loop_body
      %s23 = ssub.s32 %s18, 1
      %s24 = ssub.s32 %s18, 2
      %s25 = sadd.s32 %s18, 1
      %s26 = ssub.s32 %s18, %s25
      %p27 = scmp.eq.s32.totalorder %s26, 0
      %s29 = sadd.s32 %s28, 1
      %s30 = scalar_select %p27, %s28, %s29
      %p33 = pneg %p27
      %p34 = scmp.eq.s32.totalorder %s18, 1
      %p35 = por %p33, %p34
      %p36 = scmp.ne.s32.totalorder %s28, %s31
      %p37 = scmp.eq.s32.totalorder %s18, 0
      %p38 = por %p36, %p37
      %p39 = scmp.ne.s32.totalorder %s28, %s31
      %p40 = scmp.eq.s32.totalorder %s23, 1
      %p41 = por %p39, %p40
      %p42 = scmp.ne.s32.totalorder %s31, %s32
      %p43 = scmp.eq.s32.totalorder %s23, 0
      %p44 = por %p42, %p43
      %p45 = scmp.ne.s32.totalorder %s31, %s32
      %p46 = scmp.eq.s32.totalorder %s24, 1
      %p47 = por %p45, %p46
      %p49 = scmp.ne.s32.totalorder %s32, %s48
      %p50 = scmp.eq.s32.totalorder %s24, 0
      %p51 = por %p49, %p50
      %s52 = ssub.s32 %s18, %s25
      %p53 = scmp.eq.s32.totalorder %s52, 0
      %s55 = sadd.s32 %s54, 1
      %s56 = scalar_select %p53, %s54, %s55
      %p59 = pneg %p53
      %p60 = scmp.eq.s32.totalorder %s18, 1
      %p61 = por %p59, %p60
      %p62 = scmp.ne.s32.totalorder %s54, %s57
      %p63 = scmp.eq.s32.totalorder %s18, 0
      %p64 = por %p62, %p63
      %p65 = scmp.ne.s32.totalorder %s54, %s57
      %p66 = scmp.eq.s32.totalorder %s23, 1
      %p67 = por %p65, %p66
      %p68 = scmp.ne.s32.totalorder %s57, %s58
      %p69 = scmp.eq.s32.totalorder %s23, 0
      %p70 = por %p68, %p69
      %p71 = scmp.ne.s32.totalorder %s57, %s58
      %p72 = scmp.eq.s32.totalorder %s24, 1
      %p73 = por %p71, %p72
      %p75 = scmp.ne.s32.totalorder %s58, %s74
      %p76 = scmp.eq.s32.totalorder %s24, 0
      %p77 = por %p75, %p76
      %s78 = ssub.s32 %s18, %s25
      %p79 = scmp.eq.s32.totalorder %s78, 0
      %s81 = sadd.s32 %s80, 1
      %s82 = scalar_select %p79, %s80, %s81
      %p85 = pneg %p79
      %p86 = scmp.eq.s32.totalorder %s18, 1
      %p87 = por %p85, %p86
      %p88 = scmp.ne.s32.totalorder %s80, %s83
      %p89 = scmp.eq.s32.totalorder %s18, 0
      %p90 = por %p88, %p89
      %p91 = scmp.ne.s32.totalorder %s80, %s83
      %p92 = scmp.eq.s32.totalorder %s23, 1
      %p93 = por %p91, %p92
      %p94 = scmp.ne.s32.totalorder %s83, %s84
      %p95 = scmp.eq.s32.totalorder %s23, 0
      %p96 = por %p94, %p95
      %p97 = scmp.ne.s32.totalorder %s83, %s84
      %p98 = scmp.eq.s32.totalorder %s24, 1
      %p99 = por %p97, %p98
      %p101 = scmp.ne.s32.totalorder %s84, %s100
      %p102 = scmp.eq.s32.totalorder %s24, 0
      %p103 = por %p101, %p102
      %s105 = sadd.s32 %s104, 1
      %p108 = scmp.eq.s32.totalorder %s18, 1
      %p109 = scmp.ne.s32.totalorder %s104, %s106
      %p110 = scmp.eq.s32.totalorder %s18, 0
      %p111 = por %p109, %p110
      %p112 = scmp.ne.s32.totalorder %s104, %s106
      %p113 = scmp.eq.s32.totalorder %s23, 1
      %p114 = por %p112, %p113
      %p115 = scmp.ne.s32.totalorder %s106, %s107
      %p116 = scmp.eq.s32.totalorder %s23, 0
      %p117 = por %p115, %p116
      %p118 = scmp.ne.s32.totalorder %s106, %s107
      %p119 = scmp.eq.s32.totalorder %s24, 1
      %p120 = por %p118, %p119
      %p122 = scmp.ne.s32.totalorder %s107, %s121
      %p123 = scmp.eq.s32.totalorder %s24, 0
      %p124 = por %p122, %p123
      %s126 = sadd.s32 %s125, 1
      %p129 = scmp.eq.s32.totalorder %s18, 1
      %p130 = scmp.ne.s32.totalorder %s125, %s127
      %p131 = scmp.eq.s32.totalorder %s18, 0
      %p132 = por %p130, %p131
      %p133 = scmp.ne.s32.totalorder %s125, %s127
      %p134 = scmp.eq.s32.totalorder %s23, 1
      %p135 = por %p133, %p134
      %p136 = scmp.ne.s32.totalorder %s127, %s128
      %p137 = scmp.eq.s32.totalorder %s23, 0
      %p138 = por %p136, %p137
      %p139 = scmp.ne.s32.totalorder %s127, %s128
      %p140 = scmp.eq.s32.totalorder %s24, 1
      %p141 = por %p139, %p140
      %p143 = scmp.ne.s32.totalorder %s128, %s142
      %p144 = scmp.eq.s32.totalorder %s24, 0
      %p145 = por %p143, %p144
      %s147 = sadd.s32 %s146, 1
      %p150 = scmp.eq.s32.totalorder %s18, 1
      %p151 = scmp.ne.s32.totalorder %s146, %s148
      %p152 = scmp.eq.s32.totalorder %s18, 0
      %p153 = por %p151, %p152
      %p154 = scmp.ne.s32.totalorder %s146, %s148
      %p155 = scmp.eq.s32.totalorder %s23, 1
      %p156 = por %p154, %p155
      %p157 = scmp.ne.s32.totalorder %s148, %s149
      %p158 = scmp.eq.s32.totalorder %s23, 0
      %p159 = por %p157, %p158
      %p160 = scmp.ne.s32.totalorder %s148, %s149
      %p161 = scmp.eq.s32.totalorder %s24, 1
      %p162 = por %p160, %p161
      %p164 = scmp.ne.s32.totalorder %s149, %s163
      %p165 = scmp.eq.s32.totalorder %s24, 0
      %p166 = por %p164, %p165
      %s168 = sadd.s32 %s167, 1
      %p171 = scmp.eq.s32.totalorder %s18, 1
      %p172 = scmp.ne.s32.totalorder %s167, %s169
      %p173 = scmp.eq.s32.totalorder %s18, 0
      %p174 = por %p172, %p173
      %p175 = scmp.ne.s32.totalorder %s167, %s169
      %p176 = scmp.eq.s32.totalorder %s23, 1
      %p177 = por %p175, %p176
      %p178 = scmp.ne.s32.totalorder %s169, %s170
      %p179 = scmp.eq.s32.totalorder %s23, 0
      %p180 = por %p178, %p179
      %p181 = scmp.ne.s32.totalorder %s169, %s170
      %p182 = scmp.eq.s32.totalorder %s24, 1
      %p183 = por %p181, %p182
      %p185 = scmp.ne.s32.totalorder %s170, %s184
      %p186 = scmp.eq.s32.totalorder %s24, 0
      %p187 = por %p185, %p186
      %s189 = sadd.s32 %s188, 1
      %p192 = scmp.eq.s32.totalorder %s18, 1
      %p193 = scmp.ne.s32.totalorder %s188, %s190
      %p194 = scmp.eq.s32.totalorder %s18, 0
      %p195 = por %p193, %p194
      %p196 = scmp.ne.s32.totalorder %s188, %s190
      %p197 = scmp.eq.s32.totalorder %s23, 1
      %p198 = por %p196, %p197
      %p199 = scmp.ne.s32.totalorder %s190, %s191
      %p200 = scmp.eq.s32.totalorder %s23, 0
      %p201 = por %p199, %p200
      %p202 = scmp.ne.s32.totalorder %s190, %s191
      %p203 = scmp.eq.s32.totalorder %s24, 1
      %p204 = por %p202, %p203
      %p206 = scmp.ne.s32.totalorder %s191, %s205
      %p207 = scmp.eq.s32.totalorder %s24, 0
      %p208 = por %p206, %p207
      %s210 = sadd.s32 %s209, 1
      %p213 = scmp.eq.s32.totalorder %s18, 1
      %p214 = scmp.ne.s32.totalorder %s209, %s211
      %p215 = scmp.eq.s32.totalorder %s18, 0
      %p216 = por %p214, %p215
      %p217 = scmp.ne.s32.totalorder %s209, %s211
      %p218 = scmp.eq.s32.totalorder %s23, 1
      %p219 = por %p217, %p218
      %p220 = scmp.ne.s32.totalorder %s211, %s212
      %p221 = scmp.eq.s32.totalorder %s23, 0
      %p222 = por %p220, %p221
      %p223 = scmp.ne.s32.totalorder %s211, %s212
      %p224 = scmp.eq.s32.totalorder %s24, 1
      %p225 = por %p223, %p224
      %p227 = scmp.ne.s32.totalorder %s212, %s226
      %p228 = scmp.eq.s32.totalorder %s24, 0
      %p229 = por %p227, %p228
      %s230 = ssub.s32 %s18, %s25
      %p231 = scmp.eq.s32.totalorder %s230, 0
      %s233 = sadd.s32 %s232, 1
      %s234 = scalar_select %p231, %s232, %s233
      %p237 = pneg %p231
      %p238 = scmp.eq.s32.totalorder %s18, 1
      %p239 = por %p237, %p238
      %p240 = scmp.ne.s32.totalorder %s232, %s235
      %p241 = scmp.eq.s32.totalorder %s18, 0
      %p242 = por %p240, %p241
      %p243 = scmp.ne.s32.totalorder %s232, %s235
      %p244 = scmp.eq.s32.totalorder %s23, 1
      %p245 = por %p243, %p244
      %p246 = scmp.ne.s32.totalorder %s235, %s236
      %p247 = scmp.eq.s32.totalorder %s23, 0
      %p248 = por %p246, %p247
      %p249 = scmp.ne.s32.totalorder %s235, %s236
      %p250 = scmp.eq.s32.totalorder %s24, 1
      %p251 = por %p249, %p250
      %p253 = scmp.ne.s32.totalorder %s236, %s252
      %p254 = scmp.eq.s32.totalorder %s24, 0
      %p255 = por %p253, %p254
      %p256 = scmp.le.s32.totalorder 1, %s18
      %p257 = scmp.lt.s32.totalorder %s18, 3
      %p258 = pnand %p256, %p257
      %p259 = pneg %p258
      // Predicated region
      $region9: #{nlba_forward.1} parent=5 // pred_check
        _
      $region10: #{nlba_forward.1} parent=5 // pred_check_branch
        %261 = sbr.rel (%p258) target = $region12
      $region11: #{nlba_forward.1} parent=5 // pred_region
        %s262 = ssub.s32 %s18, 1
        // Predicated region
        $region13: #{nlba_forward.1} parent=11 // pred_check
          %p263 = pneg %p117
        $region14: #{nlba_forward.1} parent=11 // pred_check_branch
          %265 = sbr.rel (%p263) target = $region16
        $region15: #{nlba_forward.1} parent=11 // pred_region
          _
        $region16: #{nlba_forward.1} parent=11 // pred_fallthru
          _
        // Predicated region
        $region17: #{nlba_forward.1} parent=11 // pred_check
          %p266 = pneg %p138
        $region18: #{nlba_forward.1} parent=11 // pred_check_branch
          %268 = sbr.rel (%p266) target = $region20
        $region19: #{nlba_forward.1} parent=11 // pred_region
          _
        $region20: #{nlba_forward.1} parent=11 // pred_fallthru
          _
        // Predicated region
        $region21: #{nlba_forward.1} parent=11 // pred_check
          %p269 = pneg %p159
        $region22: #{nlba_forward.1} parent=11 // pred_check_branch
          %271 = sbr.rel (%p269) target = $region24
        $region23: #{nlba_forward.1} parent=11 // pred_region
          _
        $region24: #{nlba_forward.1} parent=11 // pred_fallthru
          _
        // Predicated region
        $region25: #{nlba_forward.1} parent=11 // pred_check
          %p272 = pneg %p180
        $region26: #{nlba_forward.1} parent=11 // pred_check_branch
          %274 = sbr.rel (%p272) target = $region28
        $region27: #{nlba_forward.1} parent=11 // pred_region
          _
        $region28: #{nlba_forward.1} parent=11 // pred_fallthru
          _
        // Predicated region
        $region29: #{nlba_forward.1} parent=11 // pred_check
          %p275 = pneg %p201
        $region30: #{nlba_forward.1} parent=11 // pred_check_branch
          %277 = sbr.rel (%p275) target = $region32
        $region31: #{nlba_forward.1} parent=11 // pred_region
          _
        $region32: #{nlba_forward.1} parent=11 // pred_fallthru
          _
        // Predicated region
        $region33: #{nlba_forward.1} parent=11 // pred_check
          %p278 = pneg %p222
        $region34: #{nlba_forward.1} parent=11 // pred_check_branch
          %280 = sbr.rel (%p278) target = $region36
        $region35: #{nlba_forward.1} parent=11 // pred_region
          _
        $region36: #{nlba_forward.1} parent=11 // pred_fallthru
          _
      $region12: #{nlba_forward.1} parent=5 // pred_fallthru
        _
      %p281 = scmp.lt.s32.totalorder %s18, 2
      // Predicated region
      $region37: #{nlba_forward.1} parent=5 // pred_check
        %p282 = pneg %p281
      $region38: #{nlba_forward.1} parent=5 // pred_check_branch
        %284 = sbr.rel (%p282) target = $region40
      $region39: #{nlba_forward.1} parent=5 // pred_region
        // Predicated region
        $region41: #{nlba_forward.1} parent=39 // pred_check
          %p285 = pneg %p38
        $region42: #{nlba_forward.1} parent=39 // pred_check_branch
          %287 = sbr.rel (%p285) target = $region44
        $region43: #{nlba_forward.1} parent=39 // pred_region
          %s288 = smul.u32 32, %s18
          %p289 = scmp.lt.s32.totalorder %s288, 63
          %s290 = scalar_select %p289, %s288, 63
          %s291 = smul.addr %s290, 8
          %s292 = scalar_lea.vmem %s0, %s291
          %s293 = smul.u32 32, %s18
        $region44: #{nlba_forward.1} parent=39 // pred_fallthru
          _
        // Predicated region
        $region45: #{nlba_forward.1} parent=39 // pred_check
          %p294 = pneg %p64
        $region46: #{nlba_forward.1} parent=39 // pred_check_branch
          %296 = sbr.rel (%p294) target = $region48
        $region47: #{nlba_forward.1} parent=39 // pred_region
          %s297 = smul.u32 32, %s18
          %p298 = scmp.lt.s32.totalorder %s297, 63
          %s299 = scalar_select %p298, %s297, 63
          %s300 = smul.addr %s299, 8
          %s301 = scalar_lea.vmem %s1, %s300
          %s302 = smul.u32 32, %s18
        $region48: #{nlba_forward.1} parent=39 // pred_fallthru
          _
        // Predicated region
        $region49: #{nlba_forward.1} parent=39 // pred_check
          %p303 = pneg %p90
        $region50: #{nlba_forward.1} parent=39 // pred_check_branch
          %305 = sbr.rel (%p303) target = $region52
        $region51: #{nlba_forward.1} parent=39 // pred_region
          %s306 = smul.u32 32, %s18
          %p307 = scmp.lt.s32.totalorder %s306, 63
          %s308 = scalar_select %p307, %s306, 63
          %s309 = smul.addr %s308, 8
          %s310 = scalar_lea.vmem %s2, %s309
          %s311 = smul.u32 32, %s18
        $region52: #{nlba_forward.1} parent=39 // pred_fallthru
          _
      $region40: #{nlba_forward.1} parent=5 // pred_fallthru
        _
      %p312 = scmp.le.s32.totalorder 1, %s18
      %p313 = scmp.lt.s32.totalorder %s18, 3
      %p314 = pnand %p312, %p313
      %p315 = pneg %p314
      // Predicated region
      $region53: #{nlba_forward.1} parent=5 // pred_check
        _
      $region54: #{nlba_forward.1} parent=5 // pred_check_branch
        %317 = sbr.rel (%p314) target = $region56
      $region55: #{nlba_forward.1} parent=5 // pred_region
        %s318 = ssub.s32 %s18, 1
        %s319 = smul.u32 32, %s23
        %p320 = scmp.lt.s32.totalorder %s319, 63
        %s321 = scalar_select %p320, %s319, 63
        %s322 = smul.addr %s321, 8
        %s323 = scalar_lea.vmem %s0, %s322
        %p324 = pneg %p44
        %p325 = pneg %p41
        %s326 = smul.u32 32, %s23
        %p327 = scmp.lt.s32.totalorder %s326, 63
        %s328 = scalar_select %p327, %s326, 63
        %s329 = smul.addr %s328, 8
        %s330 = scalar_lea.vmem %s1, %s329
        %p331 = pneg %p70
        %p332 = pneg %p67
        %s333 = smul.u32 32, %s23
        %p334 = scmp.lt.s32.totalorder %s333, 63
        %s335 = scalar_select %p334, %s333, 63
        %s336 = smul.addr %s335, 8
        %s337 = scalar_lea.vmem %s2, %s336
        %p338 = pneg %p96
        %p339 = pneg %p93
        %p340 = pneg %p117
        %p341 = pneg %p114
        %p342 = pneg %p138
        %p343 = pneg %p135
        %p344 = pneg %p159
        %p345 = pneg %p156
        %p346 = pneg %p180
        %p347 = pneg %p177
        %p348 = pneg %p201
        %p349 = pneg %p198
        %p350 = pneg %p222
        %p351 = pneg %p219
        %p352 = pneg %p248
        %p353 = pneg %p245
        %s354 = sand.u32 %s235, 1
        %s355 = scalar_lea.sflag [#allocation3], %s354
        %s356 = sand.u32 %s235, 1
        %s357 = smul.addr %s356, 2
        %s358 = scalar_lea.vmem [#allocation2], %s357
        %s359 = smul.u32 32, %s23
        %p360 = scmp.lt.s32.totalorder %s359, 63
        %s361 = scalar_select %p360, %s359, 63
        %s362 = smul.addr %s361, 8
        %s363 = scalar_lea.vmem %s0, %s362
        %s364 = smul.u32 32, %s23
        %s365 = smul.u32 32, %s23
        %p366 = scmp.lt.s32.totalorder %s365, 63
        %s367 = scalar_select %p366, %s365, 63
        %s368 = smul.addr %s367, 8
        %s369 = scalar_lea.vmem %s1, %s368
        %s370 = smul.u32 32, %s23
        %s371 = smul.u32 32, %s23
        %p372 = scmp.lt.s32.totalorder %s371, 63
        %s373 = scalar_select %p372, %s371, 63
        %s374 = smul.addr %s373, 8
        %s375 = scalar_lea.vmem %s2, %s374
        %s376 = smul.u32 32, %s23
        %s377 = smul.u32 2, %s23
        %v378 = vld [vmem:[%s363] sm:$0xff]
        %v379 = vld [vmem:[%s363 + $0x8] sm:$0xff]
        %v380 = vld [vmem:[%s363 + $0x10] sm:$0xff]
        %v381 = vld [vmem:[%s363 + $0x18] sm:$0xff]
        %v382 = vld [vmem:[%s363 + $0x20] sm:$0xff]
        %v383 = vld [vmem:[%s363 + $0x28] sm:$0xff]
        %v384 = vld [vmem:[%s363 + $0x30] sm:$0xff]
        %v385 = vld [vmem:[%s363 + $0x38] sm:$0xff]
        %v386 = vld [vmem:[%s363 + $0x40] sm:$0xff]
        %v387 = vld [vmem:[%s363 + $0x48] sm:$0xff]
        %v388 = vld [vmem:[%s363 + $0x50] sm:$0xff]
        %v389 = vld [vmem:[%s363 + $0x58] sm:$0xff]
        %v390 = vld [vmem:[%s363 + $0x60] sm:$0xff]
        %v391 = vld [vmem:[%s363 + $0x68] sm:$0xff]
        %v392 = vld [vmem:[%s363 + $0x70] sm:$0xff]
        %v393 = vld [vmem:[%s363 + $0x78] sm:$0xff]
        %v394 = vld [vmem:[%s363 + $0x80] sm:$0xff]
        %v395 = vld [vmem:[%s363 + $0x88] sm:$0xff]
        %v396 = vld [vmem:[%s363 + $0x90] sm:$0xff]
        %v397 = vld [vmem:[%s363 + $0x98] sm:$0xff]
        %v398 = vld [vmem:[%s363 + $0xa0] sm:$0xff]
        %v399 = vld [vmem:[%s363 + $0xa8] sm:$0xff]
        %v400 = vld [vmem:[%s363 + $0xb0] sm:$0xff]
        %v401 = vld [vmem:[%s363 + $0xb8] sm:$0xff]
        %v402 = vld [vmem:[%s363 + $0xc0] sm:$0xff]
        %v403 = vld [vmem:[%s363 + $0xc8] sm:$0xff]
        %v404 = vld [vmem:[%s363 + $0xd0] sm:$0xff]
        %v405 = vld [vmem:[%s363 + $0xd8] sm:$0xff]
        %v406 = vld [vmem:[%s363 + $0xe0] sm:$0xff]
        %v407 = vld [vmem:[%s363 + $0xe8] sm:$0xff]
        %v408 = vld [vmem:[%s363 + $0xf0] sm:$0xff]
        %v409 = vld [vmem:[%s363 + $0xf8] sm:$0xff]
        %v410 = vld [vmem:[%s369] sm:$0xff]
        %v411 = vld [vmem:[%s369 + $0x8] sm:$0xff]
        %v412 = vld [vmem:[%s369 + $0x10] sm:$0xff]
        %v413 = vld [vmem:[%s369 + $0x18] sm:$0xff]
        %v414 = vld [vmem:[%s369 + $0x20] sm:$0xff]
        %v415 = vld [vmem:[%s369 + $0x28] sm:$0xff]
        %v416 = vld [vmem:[%s369 + $0x30] sm:$0xff]
        %v417 = vld [vmem:[%s369 + $0x38] sm:$0xff]
        %v418 = vld [vmem:[%s369 + $0x40] sm:$0xff]
        %v419 = vld [vmem:[%s369 + $0x48] sm:$0xff]
        %v420 = vld [vmem:[%s369 + $0x50] sm:$0xff]
        %v421 = vld [vmem:[%s369 + $0x58] sm:$0xff]
        %v422 = vld [vmem:[%s369 + $0x60] sm:$0xff]
        %v423 = vld [vmem:[%s369 + $0x68] sm:$0xff]
        %v424 = vld [vmem:[%s369 + $0x70] sm:$0xff]
        %v425 = vld [vmem:[%s369 + $0x78] sm:$0xff]
        %v426 = vld [vmem:[%s369 + $0x80] sm:$0xff]
        %v427 = vld [vmem:[%s369 + $0x88] sm:$0xff]
        %v428 = vld [vmem:[%s369 + $0x90] sm:$0xff]
        %v429 = vld [vmem:[%s369 + $0x98] sm:$0xff]
        %v430 = vld [vmem:[%s369 + $0xa0] sm:$0xff]
        %v431 = vld [vmem:[%s369 + $0xa8] sm:$0xff]
        %v432 = vld [vmem:[%s369 + $0xb0] sm:$0xff]
        %v433 = vld [vmem:[%s369 + $0xb8] sm:$0xff]
        %v434 = vld [vmem:[%s369 + $0xc0] sm:$0xff]
        %v435 = vld [vmem:[%s369 + $0xc8] sm:$0xff]
        %v436 = vld [vmem:[%s369 + $0xd0] sm:$0xff]
        %v437 = vld [vmem:[%s369 + $0xd8] sm:$0xff]
        %v438 = vld [vmem:[%s369 + $0xe0] sm:$0xff]
        %v439 = vld [vmem:[%s369 + $0xe8] sm:$0xff]
        %v440 = vld [vmem:[%s369 + $0xf0] sm:$0xff]
        %v441 = vld [vmem:[%s369 + $0xf8] sm:$0xff]
        %v442 = vld [vmem:[%s375] sm:$0xff]
        %v443 = vld [vmem:[%s375 + $0x8] sm:$0xff]
        %v444 = vld [vmem:[%s375 + $0x10] sm:$0xff]
        %v445 = vld [vmem:[%s375 + $0x18] sm:$0xff]
        %v446 = vld [vmem:[%s375 + $0x20] sm:$0xff]
        %v447 = vld [vmem:[%s375 + $0x28] sm:$0xff]
        %v448 = vld [vmem:[%s375 + $0x30] sm:$0xff]
        %v449 = vld [vmem:[%s375 + $0x38] sm:$0xff]
        %v450 = vld [vmem:[%s375 + $0x40] sm:$0xff]
        %v451 = vld [vmem:[%s375 + $0x48] sm:$0xff]
        %v452 = vld [vmem:[%s375 + $0x50] sm:$0xff]
        %v453 = vld [vmem:[%s375 + $0x58] sm:$0xff]
        %v454 = vld [vmem:[%s375 + $0x60] sm:$0xff]
        %v455 = vld [vmem:[%s375 + $0x68] sm:$0xff]
        %v456 = vld [vmem:[%s375 + $0x70] sm:$0xff]
        %v457 = vld [vmem:[%s375 + $0x78] sm:$0xff]
        %v458 = vld [vmem:[%s375 + $0x80] sm:$0xff]
        %v459 = vld [vmem:[%s375 + $0x88] sm:$0xff]
        %v460 = vld [vmem:[%s375 + $0x90] sm:$0xff]
        %v461 = vld [vmem:[%s375 + $0x98] sm:$0xff]
        %v462 = vld [vmem:[%s375 + $0xa0] sm:$0xff]
        %v463 = vld [vmem:[%s375 + $0xa8] sm:$0xff]
        %v464 = vld [vmem:[%s375 + $0xb0] sm:$0xff]
        %v465 = vld [vmem:[%s375 + $0xb8] sm:$0xff]
        %v466 = vld [vmem:[%s375 + $0xc0] sm:$0xff]
        %v467 = vld [vmem:[%s375 + $0xc8] sm:$0xff]
        %v468 = vld [vmem:[%s375 + $0xd0] sm:$0xff]
        %v469 = vld [vmem:[%s375 + $0xd8] sm:$0xff]
        %v470 = vld [vmem:[%s375 + $0xe0] sm:$0xff]
        %v471 = vld [vmem:[%s375 + $0xe8] sm:$0xff]
        %v472 = vld [vmem:[%s375 + $0xf0] sm:$0xff]
        %v473 = vld [vmem:[%s375 + $0xf8] sm:$0xff]
        %v474 = vld [vmem:[%s3] sm:$0xff]
        %v475 = vld [vmem:[%s3 + $0x8] sm:$0xff]
        %v476 = vld [vmem:[%s3 + $0x10] sm:$0xff]
        %v477 = vld [vmem:[%s3 + $0x18] sm:$0xff]
        %v478 = vld [vmem:[%s4] sm:$0xff]
        %v479 = vld [vmem:[%s4 + $0x8] sm:$0xff]
        %v480 = vld [vmem:[%s4 + $0x10] sm:$0xff]
        %v481 = vld [vmem:[%s4 + $0x18] sm:$0xff]
        %vm482 = vcmask 261120
        %v484 = vsel %vm482, %v410, 0
        %v487 = vsel %vm482, %v411, 0
        %v490 = vsel %vm482, %v412, 0
        %v493 = vsel %vm482, %v413, 0
        %v496 = vsel %vm482, %v414, 0
        %v499 = vsel %vm482, %v415, 0
        %v502 = vsel %vm482, %v416, 0
        %v505 = vsel %vm482, %v417, 0
        %v508 = vsel %vm482, %v418, 0
        %v511 = vsel %vm482, %v419, 0
        %v514 = vsel %vm482, %v420, 0
        %v517 = vsel %vm482, %v421, 0
        %v520 = vsel %vm482, %v422, 0
        %v523 = vsel %vm482, %v423, 0
        %v526 = vsel %vm482, %v424, 0
        %v529 = vsel %vm482, %v425, 0
        %v532 = vsel %vm482, %v426, 0
        %v535 = vsel %vm482, %v427, 0
        %v538 = vsel %vm482, %v428, 0
        %v541 = vsel %vm482, %v429, 0
        %v544 = vsel %vm482, %v430, 0
        %v547 = vsel %vm482, %v431, 0
        %v550 = vsel %vm482, %v432, 0
        %v553 = vsel %vm482, %v433, 0
        %v556 = vsel %vm482, %v434, 0
        %v559 = vsel %vm482, %v435, 0
        %v562 = vsel %vm482, %v436, 0
        %v565 = vsel %vm482, %v437, 0
        %v568 = vsel %vm482, %v438, 0
        %v571 = vsel %vm482, %v439, 0
        %v574 = vsel %vm482, %v440, 0
        %v577 = vsel %vm482, %v441, 0
        %579 = vmatpush.msra.mxu0 0.0
        %580 = vmatpush.msra.mxu0 0.0
        %581 = vmatpush.msra.mxu0 0.0
        %582 = vmatpush.msra.mxu0 0.0
        %583 = vmatpush.msra.mxu0 0.0
        %584 = vmatpush.msra.mxu0 0.0
        %585 = vmatpush.msra.mxu0 0.0
        %586 = vmatpush.msra.mxu0 0.0
        %587 = vmatpush.msra.mxu0 0.0
        %588 = vmatpush.msra.mxu0 0.0
        %589 = vmatpush.msra.mxu0 0.0
        %590 = vmatpush.msra.mxu0 0.0
        %591 = vmatpush.msra.mxu0 %v481
        %592 = vmatpush.msra.mxu0 %v480
        %593 = vmatpush.msra.mxu0 %v479
        %594 = vmatpush.msra.mxu0 %v478
        %595 = vmatmul.f32.gmra.mxu0 %v484
        %v596 = vpop.f32.mrf.mxu0
        %v597 = vadd.f32 0.0, %v596
        %598 = vmatmul.f32.gmra.mxu0 %v487
        %v599 = vpop.f32.mrf.mxu0
        %v600 = vadd.f32 0.0, %v599
        %601 = vmatmul.f32.gmra.mxu0 %v490
        %v602 = vpop.f32.mrf.mxu0
        %v603 = vadd.f32 0.0, %v602
        %604 = vmatmul.f32.gmra.mxu0 %v493
        %v605 = vpop.f32.mrf.mxu0
        %v606 = vadd.f32 0.0, %v605
        %607 = vmatmul.f32.gmra.mxu0 %v496
        %v608 = vpop.f32.mrf.mxu0
        %v609 = vadd.f32 0.0, %v608
        %610 = vmatmul.f32.gmra.mxu0 %v499
        %v611 = vpop.f32.mrf.mxu0
        %v612 = vadd.f32 0.0, %v611
        %613 = vmatmul.f32.gmra.mxu0 %v502
        %v614 = vpop.f32.mrf.mxu0
        %v615 = vadd.f32 0.0, %v614
        %616 = vmatmul.f32.gmra.mxu0 %v505
        %v617 = vpop.f32.mrf.mxu0
        %v618 = vadd.f32 0.0, %v617
        %619 = vmatmul.f32.gmra.mxu0 %v508
        %v620 = vpop.f32.mrf.mxu0
        %v621 = vadd.f32 0.0, %v620
        %622 = vmatmul.f32.gmra.mxu0 %v511
        %v623 = vpop.f32.mrf.mxu0
        %v624 = vadd.f32 0.0, %v623
        %625 = vmatmul.f32.gmra.mxu0 %v514
        %v626 = vpop.f32.mrf.mxu0
        %v627 = vadd.f32 0.0, %v626
        %628 = vmatmul.f32.gmra.mxu0 %v517
        %v629 = vpop.f32.mrf.mxu0
        %v630 = vadd.f32 0.0, %v629
        %631 = vmatmul.f32.gmra.mxu0 %v520
        %v632 = vpop.f32.mrf.mxu0
        %v633 = vadd.f32 0.0, %v632
        %634 = vmatmul.f32.gmra.mxu0 %v523
        %v635 = vpop.f32.mrf.mxu0
        %v636 = vadd.f32 0.0, %v635
        %637 = vmatmul.f32.gmra.mxu0 %v526
        %v638 = vpop.f32.mrf.mxu0
        %v639 = vadd.f32 0.0, %v638
        %640 = vmatmul.f32.gmra.mxu0 %v529
        %v641 = vpop.f32.mrf.mxu0
        %v642 = vadd.f32 0.0, %v641
        %643 = vmatmul.f32.gmra.mxu0 %v532
        %v644 = vpop.f32.mrf.mxu0
        %v645 = vadd.f32 0.0, %v644
        %646 = vmatmul.f32.gmra.mxu0 %v535
        %v647 = vpop.f32.mrf.mxu0
        %v648 = vadd.f32 0.0, %v647
        %649 = vmatmul.f32.gmra.mxu0 %v538
        %v650 = vpop.f32.mrf.mxu0
        %v651 = vadd.f32 0.0, %v650
        %652 = vmatmul.f32.gmra.mxu0 %v541
        %v653 = vpop.f32.mrf.mxu0
        %v654 = vadd.f32 0.0, %v653
        %655 = vmatmul.f32.gmra.mxu0 %v544
        %v656 = vpop.f32.mrf.mxu0
        %v657 = vadd.f32 0.0, %v656
        %658 = vmatmul.f32.gmra.mxu0 %v547
        %v659 = vpop.f32.mrf.mxu0
        %v660 = vadd.f32 0.0, %v659
        %661 = vmatmul.f32.gmra.mxu0 %v550
        %v662 = vpop.f32.mrf.mxu0
        %v663 = vadd.f32 0.0, %v662
        %664 = vmatmul.f32.gmra.mxu0 %v553
        %v665 = vpop.f32.mrf.mxu0
        %v666 = vadd.f32 0.0, %v665
        %667 = vmatmul.f32.gmra.mxu0 %v556
        %v668 = vpop.f32.mrf.mxu0
        %v669 = vadd.f32 0.0, %v668
        %670 = vmatmul.f32.gmra.mxu0 %v559
        %v671 = vpop.f32.mrf.mxu0
        %v672 = vadd.f32 0.0, %v671
        %673 = vmatmul.f32.gmra.mxu0 %v562
        %v674 = vpop.f32.mrf.mxu0
        %v675 = vadd.f32 0.0, %v674
        %676 = vmatmul.f32.gmra.mxu0 %v565
        %v677 = vpop.f32.mrf.mxu0
        %v678 = vadd.f32 0.0, %v677
        %679 = vmatmul.f32.gmra.mxu0 %v568
        %v680 = vpop.f32.mrf.mxu0
        %v681 = vadd.f32 0.0, %v680
        %682 = vmatmul.f32.gmra.mxu0 %v571
        %v683 = vpop.f32.mrf.mxu0
        %v684 = vadd.f32 0.0, %v683
        %685 = vmatmul.f32.gmra.mxu0 %v574
        %v686 = vpop.f32.mrf.mxu0
        %v687 = vadd.f32 0.0, %v686
        %688 = vmatmul.f32.gmra.mxu0 %v577
        %v689 = vpop.f32.mrf.mxu0
        %v690 = vadd.f32 0.0, %v689
        %691 = vdwg.mxu0
        %v693 = vsel %vm482, %v378, 0
        %v696 = vsel %vm482, %v379, 0
        %v699 = vsel %vm482, %v380, 0
        %v702 = vsel %vm482, %v381, 0
        %v705 = vsel %vm482, %v382, 0
        %v708 = vsel %vm482, %v383, 0
        %v711 = vsel %vm482, %v384, 0
        %v714 = vsel %vm482, %v385, 0
        %v717 = vsel %vm482, %v386, 0
        %v720 = vsel %vm482, %v387, 0
        %v723 = vsel %vm482, %v388, 0
        %v726 = vsel %vm482, %v389, 0
        %v729 = vsel %vm482, %v390, 0
        %v732 = vsel %vm482, %v391, 0
        %v735 = vsel %vm482, %v392, 0
        %v738 = vsel %vm482, %v393, 0
        %v741 = vsel %vm482, %v394, 0
        %v744 = vsel %vm482, %v395, 0
        %v747 = vsel %vm482, %v396, 0
        %v750 = vsel %vm482, %v397, 0
        %v753 = vsel %vm482, %v398, 0
        %v756 = vsel %vm482, %v399, 0
        %v759 = vsel %vm482, %v400, 0
        %v762 = vsel %vm482, %v401, 0
        %v765 = vsel %vm482, %v402, 0
        %v768 = vsel %vm482, %v403, 0
        %v771 = vsel %vm482, %v404, 0
        %v774 = vsel %vm482, %v405, 0
        %v777 = vsel %vm482, %v406, 0
        %v780 = vsel %vm482, %v407, 0
        %v783 = vsel %vm482, %v408, 0
        %v786 = vsel %vm482, %v409, 0
        %788 = vmatpush.msra.mxu0 0.0
        %789 = vmatpush.msra.mxu0 0.0
        %790 = vmatpush.msra.mxu0 0.0
        %791 = vmatpush.msra.mxu0 0.0
        %792 = vmatpush.msra.mxu0 0.0
        %793 = vmatpush.msra.mxu0 0.0
        %794 = vmatpush.msra.mxu0 0.0
        %795 = vmatpush.msra.mxu0 0.0
        %796 = vmatpush.msra.mxu0 0.0
        %797 = vmatpush.msra.mxu0 0.0
        %798 = vmatpush.msra.mxu0 0.0
        %799 = vmatpush.msra.mxu0 0.0
        %800 = vmatpush.msra.mxu0 %v477
        %801 = vmatpush.msra.mxu0 %v476
        %802 = vmatpush.msra.mxu0 %v475
        %803 = vmatpush.msra.mxu0 %v474
        %804 = vmatmul.f32.gmra.mxu0 %v693
        %v805 = vpop.f32.mrf.mxu0
        %v806 = vadd.f32 %v597, %v805
        %807 = vmatmul.f32.gmra.mxu0 %v696
        %v808 = vpop.f32.mrf.mxu0
        %v809 = vadd.f32 %v600, %v808
        %810 = vmatmul.f32.gmra.mxu0 %v699
        %v811 = vpop.f32.mrf.mxu0
        %v812 = vadd.f32 %v603, %v811
        %813 = vmatmul.f32.gmra.mxu0 %v702
        %v814 = vpop.f32.mrf.mxu0
        %v815 = vadd.f32 %v606, %v814
        %816 = vmatmul.f32.gmra.mxu0 %v705
        %v817 = vpop.f32.mrf.mxu0
        %v818 = vadd.f32 %v609, %v817
        %819 = vmatmul.f32.gmra.mxu0 %v708
        %v820 = vpop.f32.mrf.mxu0
        %v821 = vadd.f32 %v612, %v820
        %822 = vmatmul.f32.gmra.mxu0 %v711
        %v823 = vpop.f32.mrf.mxu0
        %v824 = vadd.f32 %v615, %v823
        %825 = vmatmul.f32.gmra.mxu0 %v714
        %v826 = vpop.f32.mrf.mxu0
        %v827 = vadd.f32 %v618, %v826
        %828 = vmatmul.f32.gmra.mxu0 %v717
        %v829 = vpop.f32.mrf.mxu0
        %v830 = vadd.f32 %v621, %v829
        %831 = vmatmul.f32.gmra.mxu0 %v720
        %v832 = vpop.f32.mrf.mxu0
        %v833 = vadd.f32 %v624, %v832
        %834 = vmatmul.f32.gmra.mxu0 %v723
        %v835 = vpop.f32.mrf.mxu0
        %v836 = vadd.f32 %v627, %v835
        %837 = vmatmul.f32.gmra.mxu0 %v726
        %v838 = vpop.f32.mrf.mxu0
        %v839 = vadd.f32 %v630, %v838
        %840 = vmatmul.f32.gmra.mxu0 %v729
        %v841 = vpop.f32.mrf.mxu0
        %v842 = vadd.f32 %v633, %v841
        %843 = vmatmul.f32.gmra.mxu0 %v732
        %v844 = vpop.f32.mrf.mxu0
        %v845 = vadd.f32 %v636, %v844
        %846 = vmatmul.f32.gmra.mxu0 %v735
        %v847 = vpop.f32.mrf.mxu0
        %v848 = vadd.f32 %v639, %v847
        %849 = vmatmul.f32.gmra.mxu0 %v738
        %v850 = vpop.f32.mrf.mxu0
        %v851 = vadd.f32 %v642, %v850
        %852 = vmatmul.f32.gmra.mxu0 %v741
        %v853 = vpop.f32.mrf.mxu0
        %v854 = vadd.f32 %v645, %v853
        %855 = vmatmul.f32.gmra.mxu0 %v744
        %v856 = vpop.f32.mrf.mxu0
        %v857 = vadd.f32 %v648, %v856
        %858 = vmatmul.f32.gmra.mxu0 %v747
        %v859 = vpop.f32.mrf.mxu0
        %v860 = vadd.f32 %v651, %v859
        %861 = vmatmul.f32.gmra.mxu0 %v750
        %v862 = vpop.f32.mrf.mxu0
        %v863 = vadd.f32 %v654, %v862
        %864 = vmatmul.f32.gmra.mxu0 %v753
        %v865 = vpop.f32.mrf.mxu0
        %v866 = vadd.f32 %v657, %v865
        %867 = vmatmul.f32.gmra.mxu0 %v756
        %v868 = vpop.f32.mrf.mxu0
        %v869 = vadd.f32 %v660, %v868
        %870 = vmatmul.f32.gmra.mxu0 %v759
        %v871 = vpop.f32.mrf.mxu0
        %v872 = vadd.f32 %v663, %v871
        %873 = vmatmul.f32.gmra.mxu0 %v762
        %v874 = vpop.f32.mrf.mxu0
        %v875 = vadd.f32 %v666, %v874
        %876 = vmatmul.f32.gmra.mxu0 %v765
        %v877 = vpop.f32.mrf.mxu0
        %v878 = vadd.f32 %v669, %v877
        %879 = vmatmul.f32.gmra.mxu0 %v768
        %v880 = vpop.f32.mrf.mxu0
        %v881 = vadd.f32 %v672, %v880
        %882 = vmatmul.f32.gmra.mxu0 %v771
        %v883 = vpop.f32.mrf.mxu0
        %v884 = vadd.f32 %v675, %v883
        %885 = vmatmul.f32.gmra.mxu0 %v774
        %v886 = vpop.f32.mrf.mxu0
        %v887 = vadd.f32 %v678, %v886
        %888 = vmatmul.f32.gmra.mxu0 %v777
        %v889 = vpop.f32.mrf.mxu0
        %v890 = vadd.f32 %v681, %v889
        %891 = vmatmul.f32.gmra.mxu0 %v780
        %v892 = vpop.f32.mrf.mxu0
        %v893 = vadd.f32 %v684, %v892
        %894 = vmatmul.f32.gmra.mxu0 %v783
        %v895 = vpop.f32.mrf.mxu0
        %v896 = vadd.f32 %v687, %v895
        %897 = vmatmul.f32.gmra.mxu0 %v786
        %v898 = vpop.f32.mrf.mxu0
        %v899 = vadd.f32 %v690, %v898
        %900 = vdwg.mxu0
        %v901 = vld [vmem:[%s5] sm:$0xff]
        %v902 = vld [vmem:[%s5 + $0x8] sm:$0xff]
        %v903 = vld [vmem:[%s5 + $0x10] sm:$0xff]
        %v904 = vld [vmem:[%s5 + $0x18] sm:$0xff]
        %v906 = vsel %vm482, %v442, 0
        %v909 = vsel %vm482, %v443, 0
        %v912 = vsel %vm482, %v444, 0
        %v915 = vsel %vm482, %v445, 0
        %v918 = vsel %vm482, %v446, 0
        %v921 = vsel %vm482, %v447, 0
        %v924 = vsel %vm482, %v448, 0
        %v927 = vsel %vm482, %v449, 0
        %v930 = vsel %vm482, %v450, 0
        %v933 = vsel %vm482, %v451, 0
        %v936 = vsel %vm482, %v452, 0
        %v939 = vsel %vm482, %v453, 0
        %v942 = vsel %vm482, %v454, 0
        %v945 = vsel %vm482, %v455, 0
        %v948 = vsel %vm482, %v456, 0
        %v951 = vsel %vm482, %v457, 0
        %v954 = vsel %vm482, %v458, 0
        %v957 = vsel %vm482, %v459, 0
        %v960 = vsel %vm482, %v460, 0
        %v963 = vsel %vm482, %v461, 0
        %v966 = vsel %vm482, %v462, 0
        %v969 = vsel %vm482, %v463, 0
        %v972 = vsel %vm482, %v464, 0
        %v975 = vsel %vm482, %v465, 0
        %v978 = vsel %vm482, %v466, 0
        %v981 = vsel %vm482, %v467, 0
        %v984 = vsel %vm482, %v468, 0
        %v987 = vsel %vm482, %v469, 0
        %v990 = vsel %vm482, %v470, 0
        %v993 = vsel %vm482, %v471, 0
        %v996 = vsel %vm482, %v472, 0
        %v999 = vsel %vm482, %v473, 0
        %1001 = vmatpush.msra.mxu0 0.0
        %1002 = vmatpush.msra.mxu0 0.0
        %1003 = vmatpush.msra.mxu0 0.0
        %1004 = vmatpush.msra.mxu0 0.0
        %1005 = vmatpush.msra.mxu0 0.0
        %1006 = vmatpush.msra.mxu0 0.0
        %1007 = vmatpush.msra.mxu0 0.0
        %1008 = vmatpush.msra.mxu0 0.0
        %1009 = vmatpush.msra.mxu0 0.0
        %1010 = vmatpush.msra.mxu0 0.0
        %1011 = vmatpush.msra.mxu0 0.0
        %1012 = vmatpush.msra.mxu0 0.0
        %1013 = vmatpush.msra.mxu0 %v904
        %1014 = vmatpush.msra.mxu0 %v903
        %1015 = vmatpush.msra.mxu0 %v902
        %1016 = vmatpush.msra.mxu0 %v901
        %1017 = vmatmul.f32.gmra.mxu0 %v906
        %v1018 = vpop.f32.mrf.mxu0
        %v1019 = vadd.f32 0.0, %v1018
        %1020 = vmatmul.f32.gmra.mxu0 %v909
        %v1021 = vpop.f32.mrf.mxu0
        %v1022 = vadd.f32 0.0, %v1021
        %1023 = vmatmul.f32.gmra.mxu0 %v912
        %v1024 = vpop.f32.mrf.mxu0
        %v1025 = vadd.f32 0.0, %v1024
        %1026 = vmatmul.f32.gmra.mxu0 %v915
        %v1027 = vpop.f32.mrf.mxu0
        %v1028 = vadd.f32 0.0, %v1027
        %1029 = vmatmul.f32.gmra.mxu0 %v918
        %v1030 = vpop.f32.mrf.mxu0
        %v1031 = vadd.f32 0.0, %v1030
        %1032 = vmatmul.f32.gmra.mxu0 %v921
        %v1033 = vpop.f32.mrf.mxu0
        %v1034 = vadd.f32 0.0, %v1033
        %1035 = vmatmul.f32.gmra.mxu0 %v924
        %v1036 = vpop.f32.mrf.mxu0
        %v1037 = vadd.f32 0.0, %v1036
        %1038 = vmatmul.f32.gmra.mxu0 %v927
        %v1039 = vpop.f32.mrf.mxu0
        %v1040 = vadd.f32 0.0, %v1039
        %1041 = vmatmul.f32.gmra.mxu0 %v930
        %v1042 = vpop.f32.mrf.mxu0
        %v1043 = vadd.f32 0.0, %v1042
        %1044 = vmatmul.f32.gmra.mxu0 %v933
        %v1045 = vpop.f32.mrf.mxu0
        %v1046 = vadd.f32 0.0, %v1045
        %1047 = vmatmul.f32.gmra.mxu0 %v936
        %v1048 = vpop.f32.mrf.mxu0
        %v1049 = vadd.f32 0.0, %v1048
        %1050 = vmatmul.f32.gmra.mxu0 %v939
        %v1051 = vpop.f32.mrf.mxu0
        %v1052 = vadd.f32 0.0, %v1051
        %1053 = vmatmul.f32.gmra.mxu0 %v942
        %v1054 = vpop.f32.mrf.mxu0
        %v1055 = vadd.f32 0.0, %v1054
        %1056 = vmatmul.f32.gmra.mxu0 %v945
        %v1057 = vpop.f32.mrf.mxu0
        %v1058 = vadd.f32 0.0, %v1057
        %1059 = vmatmul.f32.gmra.mxu0 %v948
        %v1060 = vpop.f32.mrf.mxu0
        %v1061 = vadd.f32 0.0, %v1060
        %1062 = vmatmul.f32.gmra.mxu0 %v951
        %v1063 = vpop.f32.mrf.mxu0
        %v1064 = vadd.f32 0.0, %v1063
        %1065 = vmatmul.f32.gmra.mxu0 %v954
        %v1066 = vpop.f32.mrf.mxu0
        %v1067 = vadd.f32 0.0, %v1066
        %1068 = vmatmul.f32.gmra.mxu0 %v957
        %v1069 = vpop.f32.mrf.mxu0
        %v1070 = vadd.f32 0.0, %v1069
        %1071 = vmatmul.f32.gmra.mxu0 %v960
        %v1072 = vpop.f32.mrf.mxu0
        %v1073 = vadd.f32 0.0, %v1072
        %1074 = vmatmul.f32.gmra.mxu0 %v963
        %v1075 = vpop.f32.mrf.mxu0
        %v1076 = vadd.f32 0.0, %v1075
        %1077 = vmatmul.f32.gmra.mxu0 %v966
        %v1078 = vpop.f32.mrf.mxu0
        %v1079 = vadd.f32 0.0, %v1078
        %1080 = vmatmul.f32.gmra.mxu0 %v969
        %v1081 = vpop.f32.mrf.mxu0
        %v1082 = vadd.f32 0.0, %v1081
        %1083 = vmatmul.f32.gmra.mxu0 %v972
        %v1084 = vpop.f32.mrf.mxu0
        %v1085 = vadd.f32 0.0, %v1084
        %1086 = vmatmul.f32.gmra.mxu0 %v975
        %v1087 = vpop.f32.mrf.mxu0
        %v1088 = vadd.f32 0.0, %v1087
        %1089 = vmatmul.f32.gmra.mxu0 %v978
        %v1090 = vpop.f32.mrf.mxu0
        %v1091 = vadd.f32 0.0, %v1090
        %1092 = vmatmul.f32.gmra.mxu0 %v981
        %v1093 = vpop.f32.mrf.mxu0
        %v1094 = vadd.f32 0.0, %v1093
        %1095 = vmatmul.f32.gmra.mxu0 %v984
        %v1096 = vpop.f32.mrf.mxu0
        %v1097 = vadd.f32 0.0, %v1096
        %1098 = vmatmul.f32.gmra.mxu0 %v987
        %v1099 = vpop.f32.mrf.mxu0
        %v1100 = vadd.f32 0.0, %v1099
        %1101 = vmatmul.f32.gmra.mxu0 %v990
        %v1102 = vpop.f32.mrf.mxu0
        %v1103 = vadd.f32 0.0, %v1102
        %1104 = vmatmul.f32.gmra.mxu0 %v993
        %v1105 = vpop.f32.mrf.mxu0
        %v1106 = vadd.f32 0.0, %v1105
        %1107 = vmatmul.f32.gmra.mxu0 %v996
        %v1108 = vpop.f32.mrf.mxu0
        %v1109 = vadd.f32 0.0, %v1108
        %1110 = vmatmul.f32.gmra.mxu0 %v999
        %v1111 = vpop.f32.mrf.mxu0
        %v1112 = vadd.f32 0.0, %v1111
        %1113 = vdwg.mxu0
        %v1114 = vadd.f32 %v806, %v1019
        %v1115 = vadd.f32 %v809, %v1022
        %v1116 = vadd.f32 %v812, %v1025
        %v1117 = vadd.f32 %v815, %v1028
        %v1118 = vadd.f32 %v818, %v1031
        %v1119 = vadd.f32 %v821, %v1034
        %v1120 = vadd.f32 %v824, %v1037
        %v1121 = vadd.f32 %v827, %v1040
        %v1122 = vadd.f32 %v830, %v1043
        %v1123 = vadd.f32 %v833, %v1046
        %v1124 = vadd.f32 %v836, %v1049
        %v1125 = vadd.f32 %v839, %v1052
        %v1126 = vadd.f32 %v842, %v1055
        %v1127 = vadd.f32 %v845, %v1058
        %v1128 = vadd.f32 %v848, %v1061
        %v1129 = vadd.f32 %v851, %v1064
        %v1130 = vadd.f32 %v854, %v1067
        %v1131 = vadd.f32 %v857, %v1070
        %v1132 = vadd.f32 %v860, %v1073
        %v1133 = vadd.f32 %v863, %v1076
        %v1134 = vadd.f32 %v866, %v1079
        %v1135 = vadd.f32 %v869, %v1082
        %v1136 = vadd.f32 %v872, %v1085
        %v1137 = vadd.f32 %v875, %v1088
        %v1138 = vadd.f32 %v878, %v1091
        %v1139 = vadd.f32 %v881, %v1094
        %v1140 = vadd.f32 %v884, %v1097
        %v1141 = vadd.f32 %v887, %v1100
        %v1142 = vadd.f32 %v890, %v1103
        %v1143 = vadd.f32 %v893, %v1106
        %v1144 = vadd.f32 %v896, %v1109
        %v1145 = vadd.f32 %v899, %v1112
        %v1146 = vmax.f32 %v1114, 0.0
        %v1147 = vmax.f32 %v1115, 0.0
        %v1148 = vmax.f32 %v1116, 0.0
        %v1149 = vmax.f32 %v1117, 0.0
        %v1150 = vmax.f32 %v1118, 0.0
        %v1151 = vmax.f32 %v1119, 0.0
        %v1152 = vmax.f32 %v1120, 0.0
        %v1153 = vmax.f32 %v1121, 0.0
        %v1154 = vmax.f32 %v1122, 0.0
        %v1155 = vmax.f32 %v1123, 0.0
        %v1156 = vmax.f32 %v1124, 0.0
        %v1157 = vmax.f32 %v1125, 0.0
        %v1158 = vmax.f32 %v1126, 0.0
        %v1159 = vmax.f32 %v1127, 0.0
        %v1160 = vmax.f32 %v1128, 0.0
        %v1161 = vmax.f32 %v1129, 0.0
        %v1162 = vmax.f32 %v1130, 0.0
        %v1163 = vmax.f32 %v1131, 0.0
        %v1164 = vmax.f32 %v1132, 0.0
        %v1165 = vmax.f32 %v1133, 0.0
        %v1166 = vmax.f32 %v1134, 0.0
        %v1167 = vmax.f32 %v1135, 0.0
        %v1168 = vmax.f32 %v1136, 0.0
        %v1169 = vmax.f32 %v1137, 0.0
        %v1170 = vmax.f32 %v1138, 0.0
        %v1171 = vmax.f32 %v1139, 0.0
        %v1172 = vmax.f32 %v1140, 0.0
        %v1173 = vmax.f32 %v1141, 0.0
        %v1174 = vmax.f32 %v1142, 0.0
        %v1175 = vmax.f32 %v1143, 0.0
        %v1176 = vmax.f32 %v1144, 0.0
        %v1177 = vmax.f32 %v1145, 0.0
        %v1178 = vld [vmem:[%s6] sm:$0x1]
        %v1179 = vld [vmem:[%s7] sm:$0x1]
        %v1181 = vsel %vm482, %v1179, 0
        %1183 = vmatpush.xpose.msra.mxu0 %v529
        %1184 = vmatpush.xpose.msra.mxu0 %v526
        %1185 = vmatpush.xpose.msra.mxu0 %v523
        %1186 = vmatpush.xpose.msra.mxu0 %v520
        %1187 = vmatpush.xpose.msra.mxu0 %v517
        %1188 = vmatpush.xpose.msra.mxu0 %v514
        %1189 = vmatpush.xpose.msra.mxu0 %v511
        %1190 = vmatpush.xpose.msra.mxu0 %v508
        %1191 = vmatpush.xpose.msra.mxu0 %v505
        %1192 = vmatpush.xpose.msra.mxu0 %v502
        %1193 = vmatpush.xpose.msra.mxu0 %v499
        %1194 = vmatpush.xpose.msra.mxu0 %v496
        %1195 = vmatpush.xpose.msra.mxu0 %v493
        %1196 = vmatpush.xpose.msra.mxu0 %v490
        %1197 = vmatpush.xpose.msra.mxu0 %v487
        %1198 = vmatpush.xpose.msra.mxu0 %v484
        %1199 = vmatmul.f32.gmra.mxu0 %v1181
        %v1200 = vpop.f32.mrf.mxu0
        %v1201 = vadd.f32 0.0, %v1200
        %1202 = vdwg.mxu0
        %1203 = vmatpush.xpose.msra.mxu0 %v577
        %1204 = vmatpush.xpose.msra.mxu0 %v574
        %1205 = vmatpush.xpose.msra.mxu0 %v571
        %1206 = vmatpush.xpose.msra.mxu0 %v568
        %1207 = vmatpush.xpose.msra.mxu0 %v565
        %1208 = vmatpush.xpose.msra.mxu0 %v562
        %1209 = vmatpush.xpose.msra.mxu0 %v559
        %1210 = vmatpush.xpose.msra.mxu0 %v556
        %1211 = vmatpush.xpose.msra.mxu0 %v553
        %1212 = vmatpush.xpose.msra.mxu0 %v550
        %1213 = vmatpush.xpose.msra.mxu0 %v547
        %1214 = vmatpush.xpose.msra.mxu0 %v544
        %1215 = vmatpush.xpose.msra.mxu0 %v541
        %1216 = vmatpush.xpose.msra.mxu0 %v538
        %1217 = vmatpush.xpose.msra.mxu0 %v535
        %1218 = vmatpush.xpose.msra.mxu0 %v532
        %1219 = vmatmul.f32.gmra.mxu0 %v1181
        %v1220 = vpop.f32.mrf.mxu0
        %v1221 = vadd.f32 0.0, %v1220
        %1222 = vdwg.mxu0
        %v1224 = vsel %vm482, %v1178, 0
        %1226 = vmatpush.xpose.msra.mxu0 %v738
        %1227 = vmatpush.xpose.msra.mxu0 %v735
        %1228 = vmatpush.xpose.msra.mxu0 %v732
        %1229 = vmatpush.xpose.msra.mxu0 %v729
        %1230 = vmatpush.xpose.msra.mxu0 %v726
        %1231 = vmatpush.xpose.msra.mxu0 %v723
        %1232 = vmatpush.xpose.msra.mxu0 %v720
        %1233 = vmatpush.xpose.msra.mxu0 %v717
        %1234 = vmatpush.xpose.msra.mxu0 %v714
        %1235 = vmatpush.xpose.msra.mxu0 %v711
        %1236 = vmatpush.xpose.msra.mxu0 %v708
        %1237 = vmatpush.xpose.msra.mxu0 %v705
        %1238 = vmatpush.xpose.msra.mxu0 %v702
        %1239 = vmatpush.xpose.msra.mxu0 %v699
        %1240 = vmatpush.xpose.msra.mxu0 %v696
        %1241 = vmatpush.xpose.msra.mxu0 %v693
        %1242 = vmatmul.f32.gmra.mxu0 %v1224
        %v1243 = vpop.f32.mrf.mxu0
        %v1244 = vadd.f32 %v1201, %v1243
        %1245 = vdwg.mxu0
        %1246 = vmatpush.xpose.msra.mxu0 %v786
        %1247 = vmatpush.xpose.msra.mxu0 %v783
        %1248 = vmatpush.xpose.msra.mxu0 %v780
        %1249 = vmatpush.xpose.msra.mxu0 %v777
        %1250 = vmatpush.xpose.msra.mxu0 %v774
        %1251 = vmatpush.xpose.msra.mxu0 %v771
        %1252 = vmatpush.xpose.msra.mxu0 %v768
        %1253 = vmatpush.xpose.msra.mxu0 %v765
        %1254 = vmatpush.xpose.msra.mxu0 %v762
        %1255 = vmatpush.xpose.msra.mxu0 %v759
        %1256 = vmatpush.xpose.msra.mxu0 %v756
        %1257 = vmatpush.xpose.msra.mxu0 %v753
        %1258 = vmatpush.xpose.msra.mxu0 %v750
        %1259 = vmatpush.xpose.msra.mxu0 %v747
        %1260 = vmatpush.xpose.msra.mxu0 %v744
        %1261 = vmatpush.xpose.msra.mxu0 %v741
        %1262 = vmatmul.f32.gmra.mxu0 %v1224
        %v1263 = vpop.f32.mrf.mxu0
        %v1264 = vadd.f32 %v1221, %v1263
        %1265 = vdwg.mxu0
        %v1266 = vld [vmem:[%s8] sm:$0x1]
        %v1268 = vsel %vm482, %v1266, 0
        %v1271 = vsel %vm482, %v1146, 0
        %v1274 = vsel %vm482, %v1147, 0
        %v1277 = vsel %vm482, %v1148, 0
        %v1280 = vsel %vm482, %v1149, 0
        %v1283 = vsel %vm482, %v1150, 0
        %v1286 = vsel %vm482, %v1151, 0
        %v1289 = vsel %vm482, %v1152, 0
        %v1292 = vsel %vm482, %v1153, 0
        %v1295 = vsel %vm482, %v1154, 0
        %v1298 = vsel %vm482, %v1155, 0
        %v1301 = vsel %vm482, %v1156, 0
        %v1304 = vsel %vm482, %v1157, 0
        %v1307 = vsel %vm482, %v1158, 0
        %v1310 = vsel %vm482, %v1159, 0
        %v1313 = vsel %vm482, %v1160, 0
        %v1316 = vsel %vm482, %v1161, 0
        %v1319 = vsel %vm482, %v1162, 0
        %v1322 = vsel %vm482, %v1163, 0
        %v1325 = vsel %vm482, %v1164, 0
        %v1328 = vsel %vm482, %v1165, 0
        %v1331 = vsel %vm482, %v1166, 0
        %v1334 = vsel %vm482, %v1167, 0
        %v1337 = vsel %vm482, %v1168, 0
        %v1340 = vsel %vm482, %v1169, 0
        %v1343 = vsel %vm482, %v1170, 0
        %v1346 = vsel %vm482, %v1171, 0
        %v1349 = vsel %vm482, %v1172, 0
        %v1352 = vsel %vm482, %v1173, 0
        %v1355 = vsel %vm482, %v1174, 0
        %v1358 = vsel %vm482, %v1175, 0
        %v1361 = vsel %vm482, %v1176, 0
        %v1364 = vsel %vm482, %v1177, 0
        %1366 = vmatpush.xpose.msra.mxu0 %v1316
        %1367 = vmatpush.xpose.msra.mxu0 %v1313
        %1368 = vmatpush.xpose.msra.mxu0 %v1310
        %1369 = vmatpush.xpose.msra.mxu0 %v1307
        %1370 = vmatpush.xpose.msra.mxu0 %v1304
        %1371 = vmatpush.xpose.msra.mxu0 %v1301
        %1372 = vmatpush.xpose.msra.mxu0 %v1298
        %1373 = vmatpush.xpose.msra.mxu0 %v1295
        %1374 = vmatpush.xpose.msra.mxu0 %v1292
        %1375 = vmatpush.xpose.msra.mxu0 %v1289
        %1376 = vmatpush.xpose.msra.mxu0 %v1286
        %1377 = vmatpush.xpose.msra.mxu0 %v1283
        %1378 = vmatpush.xpose.msra.mxu0 %v1280
        %1379 = vmatpush.xpose.msra.mxu0 %v1277
        %1380 = vmatpush.xpose.msra.mxu0 %v1274
        %1381 = vmatpush.xpose.msra.mxu0 %v1271
        %1382 = vmatmul.f32.gmra.mxu0 %v1268
        %v1383 = vpop.f32.mrf.mxu0
        %v1384 = vadd.f32 %v1244, %v1383
        %1385 = vdwg.mxu0
        %1386 = vmatpush.xpose.msra.mxu0 %v1364
        %1387 = vmatpush.xpose.msra.mxu0 %v1361
        %1388 = vmatpush.xpose.msra.mxu0 %v1358
        %1389 = vmatpush.xpose.msra.mxu0 %v1355
        %1390 = vmatpush.xpose.msra.mxu0 %v1352
        %1391 = vmatpush.xpose.msra.mxu0 %v1349
        %1392 = vmatpush.xpose.msra.mxu0 %v1346
        %1393 = vmatpush.xpose.msra.mxu0 %v1343
        %1394 = vmatpush.xpose.msra.mxu0 %v1340
        %1395 = vmatpush.xpose.msra.mxu0 %v1337
        %1396 = vmatpush.xpose.msra.mxu0 %v1334
        %1397 = vmatpush.xpose.msra.mxu0 %v1331
        %1398 = vmatpush.xpose.msra.mxu0 %v1328
        %1399 = vmatpush.xpose.msra.mxu0 %v1325
        %1400 = vmatpush.xpose.msra.mxu0 %v1322
        %1401 = vmatpush.xpose.msra.mxu0 %v1319
        %1402 = vmatmul.f32.gmra.mxu0 %v1268
        %v1403 = vpop.f32.mrf.mxu0
        %v1404 = vadd.f32 %v1264, %v1403
        %1405 = vdwg.mxu0
        %v1406 = vxor.u32 %v1384, 2147483648
        %v1407 = vxor.u32 %v1404, 2147483648
        %v1408 = vmul.f32 %v1406, 1.442695
        %v1409 = vpow.pop %v1408
        %v1410 = vmul.f32 %v1407, 1.442695
        %v1411 = vpow.pop %v1410
        %v1412 = vadd.f32 %v1409, 1.0
        %v1413 = vadd.f32 %v1411, 1.0
        %v1414 = vrcp.pop %v1412
        %v1415 = vmul.f32 %v1412, %v1414
        %v1416 = vsub.f32 1.0, %v1415
        %v1417 = vmul.f32 %v1414, %v1416
        %v1418 = vadd.f32 %v1414, %v1417
        %vm1419 = vweird.f32 %v1412
        %vm1420 = vweird.f32 %v1414
        %vm1421 = vmor %vm1419, %vm1420
        %v1422 = vsel %vm1421, %v1414, %v1418
        %v1423 = vand.u32 2147483647, %v1412
        %vm1424 = vcmp.eq.f32.partialorder %v1423, 8.507059e+37
        %v1425 = vand.u32 %v1412, 2147483648
        %v1426 = vor.u32 1.1754944e-38, %v1425
        %v1427 = vsel %vm1424, %v1426, %v1422
        %v1428 = vmul.f32 1.0, %v1427
        %v1429 = vrcp.pop %v1413
        %v1430 = vmul.f32 %v1413, %v1429
        %v1431 = vsub.f32 1.0, %v1430
        %v1432 = vmul.f32 %v1429, %v1431
        %v1433 = vadd.f32 %v1429, %v1432
        %vm1434 = vweird.f32 %v1413
        %vm1435 = vweird.f32 %v1429
        %vm1436 = vmor %vm1434, %vm1435
        %v1437 = vsel %vm1436, %v1429, %v1433
        %v1438 = vand.u32 2147483647, %v1413
        %vm1439 = vcmp.eq.f32.partialorder %v1438, 8.507059e+37
        %v1440 = vand.u32 %v1413, 2147483648
        %v1441 = vor.u32 1.1754944e-38, %v1440
        %v1442 = vsel %vm1439, %v1441, %v1437
        %v1443 = vmul.f32 1.0, %v1442
        %v1446 = vrot.slane %v1443, 7
        %vm1447 = vcmask 1040384
        %v1448 = vsel %vm1447, %v1428, %v1446
        %v1450 = vlaneseq
        %vm1451 = vcmp.ge.s32.totalorder %v1450, 0
        %vm1452 = vcmp.lt.s32.totalorder %v1450, 256
        %vm1453 = vmand %vm1451, %vm1452
        %1454 = vst.msk [vmem:[%s358] sm:$0x3] %vm1453, %v1448
        %s1455 = sand.u32 %s235, 1
        %s1456 = scalar_lea.sflag [#allocation3], %s1455
        %s1457 = sand.u32 %s235, 1
        %s1458 = smul.addr %s1457, 2
        %s1459 = scalar_lea.vmem [#allocation2], %s1458
        // Predicated region
        $region57: #{nlba_forward.1} parent=55 // pred_check
          %p1460 = pneg %p245
        $region58: #{nlba_forward.1} parent=55 // pred_check_branch
          %1462 = sbr.rel (%p1460) target = $region60
        $region59: #{nlba_forward.1} parent=55 // pred_region
          %s1463 = smul.u32 2, %s23
          %1465 = vsyncadd %s1456, 0
          %s1466 = scalar_lea.hbm %s9, %s1463
          %s1468 = sshll.u32 %s1459, 4
          %s1469 = int_to_ptr.vmem [resolvable:$true] %s1468
          %s1470 = sshll.u32 %s1466, 4
          %s1471 = int_to_ptr.hbm [resolvable:$true] %s1470
          %1473 = dma.vmem_to_hbm [thread:$0]  %s1469, 32, %s1471, %s1456
        $region60: #{nlba_forward.1} parent=55 // pred_fallthru
          _
      $region56: #{nlba_forward.1} parent=5 // pred_fallthru
        _
      %p1474 = scmp.le.s32.totalorder 2, %s18
      // Predicated region
      $region61: #{nlba_forward.1} parent=5 // pred_check
        %p1475 = pneg %p1474
      $region62: #{nlba_forward.1} parent=5 // pred_check_branch
        %1477 = sbr.rel (%p1475) target = $region64
      $region63: #{nlba_forward.1} parent=5 // pred_region
        %s1478 = ssub.s32 %s18, 2
        // Predicated region
        $region65: #{nlba_forward.1} parent=63 // pred_check
          %p1479 = pneg %p251
        $region66: #{nlba_forward.1} parent=63 // pred_check_branch
          %1481 = sbr.rel (%p1479) target = $region68
        $region67: #{nlba_forward.1} parent=63 // pred_region
          %s1482 = sand.u32 %s236, 1
          %s1483 = scalar_lea.sflag [#allocation3], %s1482
          %s1484 = sand.u32 %s236, 1
          %s1485 = smul.addr %s1484, 2
          %s1486 = scalar_lea.vmem [#allocation2], %s1485
          %1488 = dma.done %s1483, 32
        $region68: #{nlba_forward.1} parent=63 // pred_fallthru
          _
      $region64: #{nlba_forward.1} parent=5 // pred_fallthru
        _
    $region6: #{nlba_forward.1} parent=1 // loop_footer
      %s22 = sadd.s32 1, %s18
    $region7: #{nlba_forward.1} parent=1 // loop_footer_branch
      %17 = sbr.rel target = $region3
    $region8: #{nlba_forward.1} parent=1 // loop_exit
      _
    %1489 = vsyncpa [#allocation3], 1
    %s1490 = scalar_lea.sflag [#allocation3], 1
    %1491 = vsyncpa %s1490, 1

</llo_original>
